<compile_context>
chip_gen: v7x
topology: tpu7x:2x2x1
jax: 0.10.0
libtpu: 0.0.40
codegen_flags: <defaults>
</compile_context>

<pallas_src>
import functools
import math

import jax
import jax.numpy as jnp
from jax.experimental import pallas as pl
from jax.experimental.pallas import tpu as pltpu


def _is_pow2(n):
    return n > 0 and (n & (n - 1)) == 0


def _log2_shifts(dim):
    shifts = []
    s = 1
    while s < dim:
        shifts.append(s)
        s *= 2
    return shifts


def _simnorm_kernel(*refs, dim, use_mxu_sum):
    if use_mxu_sum:
        x_ref, b_ref, o_ref = refs
    else:
        x_ref, o_ref = refs
        b_ref = None

    x = x_ref[...].astype(jnp.float32)          # (tm, d), lane-dense
    tm, d = x.shape

    if dim >= d:
        # Single group per row: plain row softmax (cross-lane XLU reduce).
        gmax = jnp.max(x, axis=-1, keepdims=True)
        e = jnp.exp(x - gmax)
        gsum = jnp.sum(e, axis=-1, keepdims=True)
        o_ref[...] = (e * pl.reciprocal(gsum, approx=False)).astype(o_ref.dtype)
        return

    shifts = _log2_shifts(dim)

    # Lane index as a (1, D) vector: rolling this tiny vector tells us the true
    # source lane of each full-tile roll, so the gates below are correct
    # regardless of the hardware roll-direction convention.  jnp.where
    # broadcasts the (1, D) gates along sublanes for free.
    lane = jax.lax.broadcasted_iota(jnp.int32, (1, d), 1)

    if _is_pow2(dim):
        # XOR-butterfly all-reduce inside each aligned group of `dim` lanes:
        # after stages s = 1, 2, ..., dim/2 every lane holds the full group
        # reduction.  The XOR partner (i ^ s) always stays inside the group
        # and is delivered by exactly one of {roll(s), roll(d - s)}.
        gates = []
        for s in shifts:
            src = pltpu.roll(lane, shift=s, axis=1)           # tiny (1, d) roll
            gates.append(src == jnp.bitwise_xor(lane, s))

        def partner(v, s, gate):
            return jnp.where(gate,
                             pltpu.roll(v, shift=s, axis=1),
                             pltpu.roll(v, shift=d - s, axis=1))

        gmax = x
        for s, g in zip(shifts, gates):
            gmax = jnp.maximum(gmax, partner(gmax, s, g))

        e = jnp.exp(x - gmax)

        if use_mxu_sum:
            gsum = jnp.dot(e, b_ref[...], preferred_element_type=jnp.float32,
                           precision=jax.lax.Precision.HIGHEST)
        else:
            gsum = e
            for s, g in zip(shifts, gates):
                gsum = gsum + partner(gsum, s, g)
    else:
        # Generic (non power-of-two) dim: bidirectional segmented
        # Hillis-Steele scans gated by "source lane is in my group"
        # (group id via exact f32 floor-division; lanes are small integers).
        lane_f = lane.astype(jnp.float32)
        gid = jnp.floor(lane_f / float(dim))
        gates = []
        for s in shifts:
            src_a = pltpu.roll(lane_f, shift=s, axis=1)
            src_b = pltpu.roll(lane_f, shift=d - s, axis=1)
            gates.append((jnp.floor(src_a / float(dim)) == gid,
                          jnp.floor(src_b / float(dim)) == gid))

        lo, hi = x, x
        for s, (ga, gb) in zip(shifts, gates):
            lo = jnp.where(ga, jnp.maximum(lo, pltpu.roll(lo, shift=s, axis=1)), lo)
            hi = jnp.where(gb, jnp.maximum(hi, pltpu.roll(hi, shift=d - s, axis=1)), hi)
        gmax = jnp.maximum(lo, hi)

        e = jnp.exp(x - gmax)

        if use_mxu_sum:
            gsum = jnp.dot(e, b_ref[...], preferred_element_type=jnp.float32,
                           precision=jax.lax.Precision.HIGHEST)
        else:
            slo, shi = e, e
            for s, (ga, gb) in zip(shifts, gates):
                slo = slo + jnp.where(ga, pltpu.roll(slo, shift=s, axis=1), 0.0)
                shi = shi + jnp.where(gb, pltpu.roll(shi, shift=d - s, axis=1), 0.0)
            gsum = slo + shi - e

    o_ref[...] = (e * pl.reciprocal(gsum, approx=False)).astype(o_ref.dtype)


def simnorm(x, simnorm_dim=8, *, block_rows=2048, use_mxu_sum=False,
            interpret=False):
    """SimNorm forward: softmax over contiguous groups of `simnorm_dim` along
    the last axis; shape preserved."""
    shp = x.shape
    d = int(shp[-1])
    dim = int(simnorm_dim)
    if d % dim != 0:
        raise ValueError(f"last dim {d} not divisible by simnorm_dim {dim}")

    m = int(math.prod(shp[:-1]))

    # Lane-dense repack for narrow / non-128-multiple feature dims: groups stay
    # contiguous because 128 % dim == 0, so the math is unchanged.
    m2, d2 = m, d
    if d % 128 != 0 and (128 % dim == 0) and ((m * d) % 128 == 0):
        d2 = 128
        m2 = (m * d) // 128
    x2 = x.reshape(m2, d2)

    itemsize = jnp.dtype(x.dtype).itemsize

    # ~2 MiB of f32 rows per tile: large enough to amortize the ~0.35 us
    # per-step Pallas overhead, small enough that double-buffered in/out tiles
    # plus a few live f32 temporaries stay inside a 32 MiB VMEM budget
    # (v7x-safe: 64 MiB physical).
    target_tile_bytes = 2 * 1024 * 1024
    tm = max(8, (target_tile_bytes // max(d2 * 4, 1)) // 8 * 8)
    tm = min(tm, block_rows)
    if tm >= m2:
        tm = m2                       # one block == full row extent (always legal)
        grid_m = 1
    else:
        grid_m = pl.cdiv(m2, tm)      # ragged last block -> masked writeback

    use_mxu = bool(use_mxu_sum) and (dim < d2) and (d2 <= 1024)

    operands = [x2]
    in_specs = [pl.BlockSpec((tm, d2), lambda i: (i, 0))]
    if use_mxu:
        grp = jnp.arange(d2, dtype=jnp.int32) // dim
        b = (grp[:, None] == grp[None, :]).astype(jnp.float32)   # block-diag ones
        operands.append(b)
        # Constant index_map: fetched once, stays resident across the grid.
        in_specs.append(pl.BlockSpec((d2, d2), lambda i: (0, 0)))

    n_stages = len(_log2_shifts(dim)) if dim < d2 else 1
    cost = pl.CostEstimate(
        flops=int(m2 * d2 * (6 * max(n_stages, 1) + 6)),
        transcendentals=int(m2 * d2),
        bytes_accessed=int(2 * m2 * d2 * itemsize),
    )

    out = pl.pallas_call(
        functools.partial(_simnorm_kernel, dim=dim, use_mxu_sum=use_mxu),
        out_shape=jax.ShapeDtypeStruct((m2, d2), x.dtype),
        grid_spec=pltpu.PrefetchScalarGridSpec(
            num_scalar_prefetch=0,
            grid=(grid_m,),
            in_specs=in_specs,
            out_specs=pl.BlockSpec((tm, d2), lambda i: (i, 0)),
        ),
        compiler_params=pltpu.CompilerParams(
            dimension_semantics=("parallel",),
            vmem_limit_bytes=32 * 1024 * 1024,
        ),
        cost_estimate=cost,
        interpret=interpret,
    )(*operands)

    return out.reshape(shp)


def simnorm_reference(x, simnorm_dim=8):
    shp = x.shape
    xr = x.reshape(*shp[:-1], shp[-1] // simnorm_dim, simnorm_dim)
    return jax.nn.softmax(xr, axis=-1).reshape(shp)


if __name__ == "__main__":
    key = jax.random.PRNGKey(0)
    k1, k2, k3 = jax.random.split(key, 3)

    # (batch, seq, hidden) with hidden grouped into simplices of size 8.
    B, T, D, DIM = 2, 8, 256, 8
    x = 3.0 * jax.random.normal(k1, (B, T, D), jnp.float32)

    y = jax.block_until_ready(simnorm(x, simnorm_dim=DIM))
    y_ref = simnorm_reference(x, DIM)
    assert y.shape == x.shape, y.shape
    assert bool(jnp.allclose(y, y_ref, atol=1e-5, rtol=1e-5)), "mismatch vs reference"
    group_sums = y.reshape(B, T, D // DIM, DIM).sum(-1)
    assert bool(jnp.allclose(group_sums, 1.0, atol=1e-5)), "groups do not sum to 1"

    # Row count not a multiple of 8: single full-extent block path.
    x2 = jax.random.normal(k2, (5, 1, 128), jnp.float32)
    y2 = jax.block_until_ready(simnorm(x2, simnorm_dim=DIM))
    assert bool(jnp.allclose(y2, simnorm_reference(x2, DIM), atol=1e-5, rtol=1e-5))

    # Rows not a multiple of the tile: exercises the ragged-last-block
    # (masked writeback) path that replaced the wrapper pad/slice.
    x3 = 2.0 * jax.random.normal(k3, (20, 256), jnp.float32)
    y3 = jax.block_until_ready(simnorm(x3, simnorm_dim=DIM, block_rows=8))
    assert bool(jnp.allclose(y3, simnorm_reference(x3, DIM), atol=1e-5, rtol=1e-5))

    print("KERNEL_OK")
</pallas_src>

<mosaic_0001>
module attributes {stable_mosaic.version = 11 : i64} {
  func.func @_simnorm_kernel(%arg0: i32, %arg1: memref<16x256xf32, #tpu.memory_space<vmem>>, %arg2: memref<16x256xf32, #tpu.memory_space<vmem>>) attributes {dimension_semantics = [#tpu.dimension_semantics<parallel>], iteration_bounds = array<i64: 1>, scalar_prefetch = 0 : i64, scratch_operands = 0 : i64, tpu.core_type = #tpu.core_type<tc>, window_params = [{transform_indices = @transform_0, window_bounds = array<i64: 16, 256>}, {transform_indices = @transform_1, window_bounds = array<i64: 16, 256>}]} {
    %c0 = arith.constant 0 : index
    %c0_0 = arith.constant 0 : index
    %0 = vector.load %arg1[%c0, %c0_0] : memref<16x256xf32, #tpu.memory_space<vmem>>, vector<16x256xf32>
    %1 = tpu.iota {dimensions = array<i32: 1>} : vector<1x256xi32>
    %c1_i32 = arith.constant 1 : i32
    %2 = tpu.dynamic_rotate %1 by %c1_i32 dim 1 : vector<1x256xi32>, i32 -> vector<1x256xi32>
    %c1_i32_1 = arith.constant 1 : i32
    %3 = vector.broadcast %c1_i32_1 : i32 to vector<1x256xi32>
    %4 = arith.xori %1, %3 : vector<1x256xi32>
    %5 = arith.cmpi eq, %2, %4 : vector<1x256xi32>
    %c2_i32 = arith.constant 2 : i32
    %6 = tpu.dynamic_rotate %1 by %c2_i32 dim 1 : vector<1x256xi32>, i32 -> vector<1x256xi32>
    %c2_i32_2 = arith.constant 2 : i32
    %7 = vector.broadcast %c2_i32_2 : i32 to vector<1x256xi32>
    %8 = arith.xori %1, %7 : vector<1x256xi32>
    %9 = arith.cmpi eq, %6, %8 : vector<1x256xi32>
    %c4_i32 = arith.constant 4 : i32
    %10 = tpu.dynamic_rotate %1 by %c4_i32 dim 1 : vector<1x256xi32>, i32 -> vector<1x256xi32>
    %c4_i32_3 = arith.constant 4 : i32
    %11 = vector.broadcast %c4_i32_3 : i32 to vector<1x256xi32>
    %12 = arith.xori %1, %11 : vector<1x256xi32>
    %13 = arith.cmpi eq, %10, %12 : vector<1x256xi32>
    %c1_i32_4 = arith.constant 1 : i32
    %14 = tpu.dynamic_rotate %0 by %c1_i32_4 dim 1 : vector<16x256xf32>, i32 -> vector<16x256xf32>
    %c255_i32 = arith.constant 255 : i32
    %15 = tpu.dynamic_rotate %0 by %c255_i32 dim 1 : vector<16x256xf32>, i32 -> vector<16x256xf32>
    %16 = vector.shape_cast %5 : vector<1x256xi1> to vector<1x256xi1>
    %17 = vector.broadcast %16 : vector<1x256xi1> to vector<16x256xi1>
    %18 = arith.select %17, %14, %15 : vector<16x256xi1>, vector<16x256xf32>
    %19 = arith.maximumf %0, %18 : vector<16x256xf32>
    %c2_i32_5 = arith.constant 2 : i32
    %20 = tpu.dynamic_rotate %19 by %c2_i32_5 dim 1 : vector<16x256xf32>, i32 -> vector<16x256xf32>
    %c254_i32 = arith.constant 254 : i32
    %21 = tpu.dynamic_rotate %19 by %c254_i32 dim 1 : vector<16x256xf32>, i32 -> vector<16x256xf32>
    %22 = vector.shape_cast %9 : vector<1x256xi1> to vector<1x256xi1>
    %23 = vector.broadcast %22 : vector<1x256xi1> to vector<16x256xi1>
    %24 = arith.select %23, %20, %21 : vector<16x256xi1>, vector<16x256xf32>
    %25 = arith.maximumf %19, %24 : vector<16x256xf32>
    %c4_i32_6 = arith.constant 4 : i32
    %26 = tpu.dynamic_rotate %25 by %c4_i32_6 dim 1 : vector<16x256xf32>, i32 -> vector<16x256xf32>
    %c252_i32 = arith.constant 252 : i32
    %27 = tpu.dynamic_rotate %25 by %c252_i32 dim 1 : vector<16x256xf32>, i32 -> vector<16x256xf32>
    %28 = vector.shape_cast %13 : vector<1x256xi1> to vector<1x256xi1>
    %29 = vector.broadcast %28 : vector<1x256xi1> to vector<16x256xi1>
    %30 = arith.select %29, %26, %27 : vector<16x256xi1>, vector<16x256xf32>
    %31 = arith.maximumf %25, %30 : vector<16x256xf32>
    %32 = arith.subf %0, %31 : vector<16x256xf32>
    %33 = math.exp %32 : vector<16x256xf32>
    %c1_i32_7 = arith.constant 1 : i32
    %34 = tpu.dynamic_rotate %33 by %c1_i32_7 dim 1 : vector<16x256xf32>, i32 -> vector<16x256xf32>
    %c255_i32_8 = arith.constant 255 : i32
    %35 = tpu.dynamic_rotate %33 by %c255_i32_8 dim 1 : vector<16x256xf32>, i32 -> vector<16x256xf32>
    %36 = vector.shape_cast %5 : vector<1x256xi1> to vector<1x256xi1>
    %37 = vector.broadcast %36 : vector<1x256xi1> to vector<16x256xi1>
    %38 = arith.select %37, %34, %35 : vector<16x256xi1>, vector<16x256xf32>
    %39 = arith.addf %33, %38 : vector<16x256xf32>
    %c2_i32_9 = arith.constant 2 : i32
    %40 = tpu.dynamic_rotate %39 by %c2_i32_9 dim 1 : vector<16x256xf32>, i32 -> vector<16x256xf32>
    %c254_i32_10 = arith.constant 254 : i32
    %41 = tpu.dynamic_rotate %39 by %c254_i32_10 dim 1 : vector<16x256xf32>, i32 -> vector<16x256xf32>
    %42 = vector.shape_cast %9 : vector<1x256xi1> to vector<1x256xi1>
    %43 = vector.broadcast %42 : vector<1x256xi1> to vector<16x256xi1>
    %44 = arith.select %43, %40, %41 : vector<16x256xi1>, vector<16x256xf32>
    %45 = arith.addf %39, %44 : vector<16x256xf32>
    %c4_i32_11 = arith.constant 4 : i32
    %46 = tpu.dynamic_rotate %45 by %c4_i32_11 dim 1 : vector<16x256xf32>, i32 -> vector<16x256xf32>
    %c252_i32_12 = arith.constant 252 : i32
    %47 = tpu.dynamic_rotate %45 by %c252_i32_12 dim 1 : vector<16x256xf32>, i32 -> vector<16x256xf32>
    %48 = vector.shape_cast %13 : vector<1x256xi1> to vector<1x256xi1>
    %49 = vector.broadcast %48 : vector<1x256xi1> to vector<16x256xi1>
    %50 = arith.select %49, %46, %47 : vector<16x256xi1>, vector<16x256xf32>
    %51 = arith.addf %45, %50 : vector<16x256xf32>
    %52 = tpu.reciprocal %51 : vector<16x256xf32> -> vector<16x256xf32>
    %53 = arith.mulf %33, %52 : vector<16x256xf32>
    %c0_13 = arith.constant 0 : index
    %c0_14 = arith.constant 0 : index
    %54 = vector.load %arg2[%c0_13, %c0_14] : memref<16x256xf32, #tpu.memory_space<vmem>>, vector<16x256xf32>
    tpu.vector_store %arg2[%c0_13, %c0_14], %53 {strides = array<i32>} : memref<16x256xf32, #tpu.memory_space<vmem>>, vector<16x256xf32>,
    return
  }
  func.func @transform_0(%arg0: i32) -> (i32, i32) {
    %c0_i32 = arith.constant 0 : i32
    %c0_i32_0 = arith.constant 0 : i32
    return %arg0, %c0_i32 : i32, i32
  }
  func.func @transform_1(%arg0: i32) -> (i32, i32) {
    %c0_i32 = arith.constant 0 : i32
    %c0_i32_0 = arith.constant 0 : i32
    return %arg0, %c0_i32 : i32, i32
  }
}

</mosaic_0001>

<llo_original>
// kernel: tpu_custom_call.1
$region0: #{tpu_custom_call.1}
  #allocation0 [shape = 'u32[]', space=smem, size = 0x4, offset = 0x4, fixed_abs, tag = 'smem constant byte address 0x4 - core index']
  #allocation1 [shape = 'u32[144,128]{1,0:T(1,128)}', space=vmem, size = 0x12000, scoped, tag = 'internal scratch']
  %s0 = inlined_call_operand.hbm [shape: f32[16,256], index: 0, kind: input, shape index: {}]
  %s1 = inlined_call_operand.hbm [shape: f32[16,256], index: 1, kind: output, shape index: {}]
  %s2 = sld [smem:[#allocation0]]
  $region18: #{tpu_custom_call.1} parent=0
    _
  %s4 = ssub.s32 1, %s2
  %s5 = scalar_select 0, %s4, %s2
  $region1: #{tpu_custom_call.1} parent=0
    #allocation2 [shape = 'u8[16384]{0}', space=vmem, size = 0x4000, scoped, tag = 'input window, operand 0, single buffered']
    #allocation3 [shape = 's32[1]{0}', space=sflag, size = 0x4, scoped, tag = 'scoped memory for tpu_custom_call.1']
    #allocation4 [shape = 's32[1]{0}', space=sflag, size = 0x4, scoped, tag = 'scoped memory for tpu_custom_call.1']
    #allocation5 [shape = 'u8[16384]{0}', space=vmem, size = 0x4000, scoped, tag = 'output window, operand 0, single buffered']
    %6 = vsyncpa [#allocation3], 0
    %7 = vsyncpa [#allocation4], 0
    // Predicated region
    $region2: #{tpu_custom_call.1} parent=1 // pred_check
      _
    $region3: #{tpu_custom_call.1} parent=1 // pred_check_branch
      %9 = sbr.rel (0) target = $region5
    $region4: #{tpu_custom_call.1} parent=1 // pred_region
      %s11 = ssub.s32 512, 512
      %12 = vsyncadd [#allocation3], %s11
      %s13 = sshll.u32 [#allocation2], 4
      %s14 = int_to_ptr.vmem [resolvable:$true] %s13
      %19 = dma.hbm_to_vmem [thread:$0]  %s0, 512, %s14, [#allocation3], 256, 256, 16
    $region5: #{tpu_custom_call.1} parent=1 // pred_fallthru
      _
    // Predicated region
    $region6: #{tpu_custom_call.1} parent=1 // pred_check
      _
    $region7: #{tpu_custom_call.1} parent=1 // pred_check_branch
      %21 = sbr.rel (0) target = $region9
    $region8: #{tpu_custom_call.1} parent=1 // pred_region
      %22 = dma.done [#allocation3], 512
    $region9: #{tpu_custom_call.1} parent=1 // pred_fallthru
      _
    %v23 = vld [vmem:[#allocation2] sm:$0xff]
    %v24 = vld [vmem:[#allocation2 + $0x8] sm:$0xff]
    %v25 = vld [vmem:[#allocation2 + $0x10] sm:$0xff]
    %v26 = vld [vmem:[#allocation2 + $0x18] sm:$0xff]
    %v27 = vlaneseq
    %v28 = vand.u32 %v27, 127
    %v29 = vadd.s32 %v28, 128
    %30 = vrot.lane.b32.xlu0 %v28, 1
    %v31 = vpop.permute.xlu0 %30
    %32 = vrot.lane.b32.xlu0 %v29, 1
    %v33 = vpop.permute.xlu0 %32
    %vm34 = vcmp.lt.s32.totalorder %v28, 1
    %v35 = vsel %vm34, %v31, %v33
    %v36 = vsel %vm34, %v33, %v31
    %v37 = vxor.u32 %v28, 1
    %v38 = vxor.u32 %v29, 1
    %vm39 = vcmp.eq.s32.totalorder %v36, %v37
    %vm40 = vcmp.eq.s32.totalorder %v35, %v38
    %41 = vrot.lane.b32.xlu0 %v28, 2
    %v42 = vpop.permute.xlu0 %41
    %43 = vrot.lane.b32.xlu0 %v29, 2
    %v44 = vpop.permute.xlu0 %43
    %vm45 = vcmp.lt.s32.totalorder %v28, 2
    %v46 = vsel %vm45, %v42, %v44
    %v47 = vsel %vm45, %v44, %v42
    %v48 = vxor.u32 %v28, 2
    %v49 = vxor.u32 %v29, 2
    %vm50 = vcmp.eq.s32.totalorder %v47, %v48
    %vm51 = vcmp.eq.s32.totalorder %v46, %v49
    %52 = vrot.lane.b32.xlu0 %v28, 4
    %v53 = vpop.permute.xlu0 %52
    %54 = vrot.lane.b32.xlu0 %v29, 4
    %v55 = vpop.permute.xlu0 %54
    %vm56 = vcmp.lt.s32.totalorder %v28, 4
    %v57 = vsel %vm56, %v53, %v55
    %v58 = vsel %vm56, %v55, %v53
    %v59 = vxor.u32 %v28, 4
    %v60 = vxor.u32 %v29, 4
    %vm61 = vcmp.eq.s32.totalorder %v58, %v59
    %vm62 = vcmp.eq.s32.totalorder %v57, %v60
    %63 = vrot.lane.b32.xlu0 %v23, 1
    %v64 = vpop.permute.xlu0 %63
    %65 = vrot.lane.b32.xlu0 %v25, 1
    %v66 = vpop.permute.xlu0 %65
    %67 = vrot.lane.b32.xlu0 %v24, 1
    %v68 = vpop.permute.xlu0 %67
    %69 = vrot.lane.b32.xlu0 %v26, 1
    %v70 = vpop.permute.xlu0 %69
    %v71 = vsel %vm34, %v64, %v68
    %v72 = vsel %vm34, %v66, %v70
    %v73 = vsel %vm34, %v68, %v64
    %v74 = vsel %vm34, %v70, %v66
    %75 = vrot.lane.b32.xlu0 %v23, 127
    %v76 = vpop.permute.xlu0 %75
    %77 = vrot.lane.b32.xlu0 %v25, 127
    %v78 = vpop.permute.xlu0 %77
    %79 = vrot.lane.b32.xlu0 %v24, 127
    %v80 = vpop.permute.xlu0 %79
    %81 = vrot.lane.b32.xlu0 %v26, 127
    %v82 = vpop.permute.xlu0 %81
    %vm83 = vcmp.lt.s32.totalorder %v28, 127
    %v84 = vsel %vm83, %v76, %v80
    %v85 = vsel %vm83, %v78, %v82
    %v86 = vsel %vm83, %v80, %v76
    %v87 = vsel %vm83, %v82, %v78
    %v88 = vsel %vm39, 1, 0
    %v89 = vsel %vm40, 1, 0
    %v90 = vlaneseq
    %v91 = vshrl.u32 %v90, 7
    %v92 = vsub.s32 0, %v91
    %v93 = vrot.slane %v88, %v92
    %v94 = vlaneseq
    %v95 = vshrl.u32 %v94, 7
    %v96 = vsub.s32 0, %v95
    %v97 = vrot.slane %v89, %v96
    %vm98 = vcmp.eq.s32.totalorder %v93, 1
    %vm99 = vcmp.eq.s32.totalorder %v97, 1
    %v100 = vsel %vm98, %v73, %v84
    %v101 = vsel %vm99, %v71, %v86
    %v102 = vsel %vm98, %v74, %v85
    %v103 = vsel %vm99, %v72, %v87
    %v104 = vmax.f32 %v23, %v100
    %v105 = vmax.f32 %v24, %v101
    %v106 = vmax.f32 %v25, %v102
    %v107 = vmax.f32 %v26, %v103
    %108 = vrot.lane.b32.xlu0 %v104, 2
    %v109 = vpop.permute.xlu0 %108
    %110 = vrot.lane.b32.xlu0 %v106, 2
    %v111 = vpop.permute.xlu0 %110
    %112 = vrot.lane.b32.xlu0 %v105, 2
    %v113 = vpop.permute.xlu0 %112
    %114 = vrot.lane.b32.xlu0 %v107, 2
    %v115 = vpop.permute.xlu0 %114
    %v116 = vsel %vm45, %v109, %v113
    %v117 = vsel %vm45, %v111, %v115
    %v118 = vsel %vm45, %v113, %v109
    %v119 = vsel %vm45, %v115, %v111
    %120 = vrot.lane.b32.xlu0 %v104, 126
    %v121 = vpop.permute.xlu0 %120
    %122 = vrot.lane.b32.xlu0 %v106, 126
    %v123 = vpop.permute.xlu0 %122
    %124 = vrot.lane.b32.xlu0 %v105, 126
    %v125 = vpop.permute.xlu0 %124
    %126 = vrot.lane.b32.xlu0 %v107, 126
    %v127 = vpop.permute.xlu0 %126
    %vm128 = vcmp.lt.s32.totalorder %v28, 126
    %v129 = vsel %vm128, %v121, %v125
    %v130 = vsel %vm128, %v123, %v127
    %v131 = vsel %vm128, %v125, %v121
    %v132 = vsel %vm128, %v127, %v123
    %v133 = vsel %vm50, 1, 0
    %v134 = vsel %vm51, 1, 0
    %v135 = vlaneseq
    %v136 = vshrl.u32 %v135, 7
    %v137 = vsub.s32 0, %v136
    %v138 = vrot.slane %v133, %v137
    %v139 = vlaneseq
    %v140 = vshrl.u32 %v139, 7
    %v141 = vsub.s32 0, %v140
    %v142 = vrot.slane %v134, %v141
    %vm143 = vcmp.eq.s32.totalorder %v138, 1
    %vm144 = vcmp.eq.s32.totalorder %v142, 1
    %v145 = vsel %vm143, %v118, %v129
    %v146 = vsel %vm144, %v116, %v131
    %v147 = vsel %vm143, %v119, %v130
    %v148 = vsel %vm144, %v117, %v132
    %v149 = vmax.f32 %v104, %v145
    %v150 = vmax.f32 %v105, %v146
    %v151 = vmax.f32 %v106, %v147
    %v152 = vmax.f32 %v107, %v148
    %153 = vrot.lane.b32.xlu0 %v149, 4
    %v154 = vpop.permute.xlu0 %153
    %155 = vrot.lane.b32.xlu0 %v151, 4
    %v156 = vpop.permute.xlu0 %155
    %157 = vrot.lane.b32.xlu0 %v150, 4
    %v158 = vpop.permute.xlu0 %157
    %159 = vrot.lane.b32.xlu0 %v152, 4
    %v160 = vpop.permute.xlu0 %159
    %v161 = vsel %vm56, %v154, %v158
    %v162 = vsel %vm56, %v156, %v160
    %v163 = vsel %vm56, %v158, %v154
    %v164 = vsel %vm56, %v160, %v156
    %165 = vrot.lane.b32.xlu0 %v149, 124
    %v166 = vpop.permute.xlu0 %165
    %167 = vrot.lane.b32.xlu0 %v151, 124
    %v168 = vpop.permute.xlu0 %167
    %169 = vrot.lane.b32.xlu0 %v150, 124
    %v170 = vpop.permute.xlu0 %169
    %171 = vrot.lane.b32.xlu0 %v152, 124
    %v172 = vpop.permute.xlu0 %171
    %vm173 = vcmp.lt.s32.totalorder %v28, 124
    %v174 = vsel %vm173, %v166, %v170
    %v175 = vsel %vm173, %v168, %v172
    %v176 = vsel %vm173, %v170, %v166
    %v177 = vsel %vm173, %v172, %v168
    %v178 = vsel %vm61, 1, 0
    %v179 = vsel %vm62, 1, 0
    %v180 = vlaneseq
    %v181 = vshrl.u32 %v180, 7
    %v182 = vsub.s32 0, %v181
    %v183 = vrot.slane %v178, %v182
    %v184 = vlaneseq
    %v185 = vshrl.u32 %v184, 7
    %v186 = vsub.s32 0, %v185
    %v187 = vrot.slane %v179, %v186
    %vm188 = vcmp.eq.s32.totalorder %v183, 1
    %vm189 = vcmp.eq.s32.totalorder %v187, 1
    %v190 = vsel %vm188, %v163, %v174
    %v191 = vsel %vm189, %v161, %v176
    %v192 = vsel %vm188, %v164, %v175
    %v193 = vsel %vm189, %v162, %v177
    %v194 = vmax.f32 %v149, %v190
    %v195 = vmax.f32 %v150, %v191
    %v196 = vmax.f32 %v151, %v192
    %v197 = vmax.f32 %v152, %v193
    %v198 = vsub.f32 %v23, %v194
    %v199 = vsub.f32 %v24, %v195
    %v200 = vsub.f32 %v25, %v196
    %v201 = vsub.f32 %v26, %v197
    %v202 = vmul.f32 %v198, 1.442695
    %v203 = vpow.pop %v202
    %v204 = vmul.f32 %v199, 1.442695
    %v205 = vpow.pop %v204
    %v206 = vmul.f32 %v200, 1.442695
    %v207 = vpow.pop %v206
    %v208 = vmul.f32 %v201, 1.442695
    %v209 = vpow.pop %v208
    %210 = vrot.lane.b32.xlu0 %v203, 1
    %v211 = vpop.permute.xlu0 %210
    %212 = vrot.lane.b32.xlu0 %v207, 1
    %v213 = vpop.permute.xlu0 %212
    %214 = vrot.lane.b32.xlu0 %v205, 1
    %v215 = vpop.permute.xlu0 %214
    %216 = vrot.lane.b32.xlu0 %v209, 1
    %v217 = vpop.permute.xlu0 %216
    %v218 = vsel %vm34, %v211, %v215
    %v219 = vsel %vm34, %v213, %v217
    %v220 = vsel %vm34, %v215, %v211
    %v221 = vsel %vm34, %v217, %v213
    %222 = vrot.lane.b32.xlu0 %v203, 127
    %v223 = vpop.permute.xlu0 %222
    %224 = vrot.lane.b32.xlu0 %v207, 127
    %v225 = vpop.permute.xlu0 %224
    %226 = vrot.lane.b32.xlu0 %v205, 127
    %v227 = vpop.permute.xlu0 %226
    %228 = vrot.lane.b32.xlu0 %v209, 127
    %v229 = vpop.permute.xlu0 %228
    %v230 = vsel %vm83, %v223, %v227
    %v231 = vsel %vm83, %v225, %v229
    %v232 = vsel %vm83, %v227, %v223
    %v233 = vsel %vm83, %v229, %v225
    %v234 = vsel %vm98, %v220, %v230
    %v235 = vsel %vm99, %v218, %v232
    %v236 = vsel %vm98, %v221, %v231
    %v237 = vsel %vm99, %v219, %v233
    %v238 = vadd.f32 %v203, %v234
    %v239 = vadd.f32 %v205, %v235
    %v240 = vadd.f32 %v207, %v236
    %v241 = vadd.f32 %v209, %v237
    %242 = vrot.lane.b32.xlu0 %v238, 2
    %v243 = vpop.permute.xlu0 %242
    %244 = vrot.lane.b32.xlu0 %v240, 2
    %v245 = vpop.permute.xlu0 %244
    %246 = vrot.lane.b32.xlu0 %v239, 2
    %v247 = vpop.permute.xlu0 %246
    %248 = vrot.lane.b32.xlu0 %v241, 2
    %v249 = vpop.permute.xlu0 %248
    %v250 = vsel %vm45, %v243, %v247
    %v251 = vsel %vm45, %v245, %v249
    %v252 = vsel %vm45, %v247, %v243
    %v253 = vsel %vm45, %v249, %v245
    %254 = vrot.lane.b32.xlu0 %v238, 126
    %v255 = vpop.permute.xlu0 %254
    %256 = vrot.lane.b32.xlu0 %v240, 126
    %v257 = vpop.permute.xlu0 %256
    %258 = vrot.lane.b32.xlu0 %v239, 126
    %v259 = vpop.permute.xlu0 %258
    %260 = vrot.lane.b32.xlu0 %v241, 126
    %v261 = vpop.permute.xlu0 %260
    %v262 = vsel %vm128, %v255, %v259
    %v263 = vsel %vm128, %v257, %v261
    %v264 = vsel %vm128, %v259, %v255
    %v265 = vsel %vm128, %v261, %v257
    %v266 = vsel %vm143, %v252, %v262
    %v267 = vsel %vm144, %v250, %v264
    %v268 = vsel %vm143, %v253, %v263
    %v269 = vsel %vm144, %v251, %v265
    %v270 = vadd.f32 %v238, %v266
    %v271 = vadd.f32 %v239, %v267
    %v272 = vadd.f32 %v240, %v268
    %v273 = vadd.f32 %v241, %v269
    %274 = vrot.lane.b32.xlu0 %v270, 4
    %v275 = vpop.permute.xlu0 %274
    %276 = vrot.lane.b32.xlu0 %v272, 4
    %v277 = vpop.permute.xlu0 %276
    %278 = vrot.lane.b32.xlu0 %v271, 4
    %v279 = vpop.permute.xlu0 %278
    %280 = vrot.lane.b32.xlu0 %v273, 4
    %v281 = vpop.permute.xlu0 %280
    %v282 = vsel %vm56, %v275, %v279
    %v283 = vsel %vm56, %v277, %v281
    %v284 = vsel %vm56, %v279, %v275
    %v285 = vsel %vm56, %v281, %v277
    %286 = vrot.lane.b32.xlu0 %v270, 124
    %v287 = vpop.permute.xlu0 %286
    %288 = vrot.lane.b32.xlu0 %v272, 124
    %v289 = vpop.permute.xlu0 %288
    %290 = vrot.lane.b32.xlu0 %v271, 124
    %v291 = vpop.permute.xlu0 %290
    %292 = vrot.lane.b32.xlu0 %v273, 124
    %v293 = vpop.permute.xlu0 %292
    %v294 = vsel %vm173, %v287, %v291
    %v295 = vsel %vm173, %v289, %v293
    %v296 = vsel %vm173, %v291, %v287
    %v297 = vsel %vm173, %v293, %v289
    %v298 = vsel %vm188, %v284, %v294
    %v299 = vsel %vm189, %v282, %v296
    %v300 = vsel %vm188, %v285, %v295
    %v301 = vsel %vm189, %v283, %v297
    %v302 = vadd.f32 %v270, %v298
    %v303 = vadd.f32 %v271, %v299
    %v304 = vadd.f32 %v272, %v300
    %v305 = vadd.f32 %v273, %v301
    %v306 = vrcp.pop %v302
    %v307 = vrcp.pop %v303
    %v308 = vrcp.pop %v304
    %v309 = vrcp.pop %v305
    %v310 = vmul.f32 %v203, %v306
    %v311 = vmul.f32 %v205, %v307
    %v312 = vmul.f32 %v207, %v308
    %v313 = vmul.f32 %v209, %v309
    %314 = vst [vmem:[#allocation5] sm:$0xff] %v310
    %315 = vst [vmem:[#allocation5 + $0x8] sm:$0xff] %v311
    %316 = vst [vmem:[#allocation5 + $0x10] sm:$0xff] %v312
    %317 = vst [vmem:[#allocation5 + $0x18] sm:$0xff] %v313
    // Predicated region
    $region10: #{tpu_custom_call.1} parent=1 // pred_check
      _
    $region11: #{tpu_custom_call.1} parent=1 // pred_check_branch
      %319 = sbr.rel (0) target = $region13
    $region12: #{tpu_custom_call.1} parent=1 // pred_region
      %s321 = ssub.s32 512, 512
      %322 = vsyncadd [#allocation4], %s321
      %s323 = sshll.u32 [#allocation5], 4
      %s324 = int_to_ptr.vmem [resolvable:$true] %s323
      %329 = dma.vmem_to_hbm [thread:$0]  %s324, 512, %s1, [#allocation4], 256, 256, 16
    $region13: #{tpu_custom_call.1} parent=1 // pred_fallthru
      _
    // Predicated region
    $region14: #{tpu_custom_call.1} parent=1 // pred_check
      _
    $region15: #{tpu_custom_call.1} parent=1 // pred_check_branch
      %331 = sbr.rel (0) target = $region17
    $region16: #{tpu_custom_call.1} parent=1 // pred_region
      %332 = dma.done [#allocation4], 512
    $region17: #{tpu_custom_call.1} parent=1 // pred_fallthru
      _
    %333 = vsyncpa [#allocation3], 1
    %334 = vsyncpa [#allocation4], 1

</llo_original>
